<compile_context>
chip_gen: v7x
topology: tpu7x:2x2x1
jax: 0.10.0
libtpu: 0.0.40
codegen_flags: <defaults>
</compile_context>

<pallas_src>
import functools

import jax
import jax.numpy as jnp
from jax import lax
from jax.experimental import pallas as pl
from jax.experimental.pallas import tpu as pltpu


def _conv_rows_kernel(x_ref, w_ref, b_ref, o_ref, *, K):
    """Conv for one output row-strip of one image; all kx taps pre-banded.

    x_ref: (K, 1, tile_h, Wp*Cin)  ky-shifted, lane-folded row strips
    w_ref: (K, Wp*Cin, W*Cconv)    banded weights (resident)
    b_ref: (1, W*Cconv)            bias tiled per output pixel (f32, resident)
    o_ref: (1, tile_h, W*Cconv)    lane-dense output row strip
    """
    acc = jnp.dot(x_ref[0, 0], w_ref[0], preferred_element_type=jnp.float32)
    for ky in range(1, K):                                # K-1 more MXU matmuls
        acc = acc + jnp.dot(x_ref[ky, 0], w_ref[ky],
                            preferred_element_type=jnp.float32)
    acc = acc + b_ref[...]                                # f32 bias, broadcast
    o_ref[0] = acc.astype(o_ref.dtype)                    # dense (tile_h, W*Cconv)


def _pick_tile_h(H, fixed_bytes, per_row_bytes, budget_bytes):
    """Largest row-strip height (multiple of 8 dividing H) fitting the budget."""
    cands = [th for th in range(8, H + 1, 8) if H % th == 0]
    if not cands:
        return H
    best = cands[0]
    for th in cands:
        if fixed_bytes + th * per_row_bytes <= budget_bytes:
            best = th
    return best


@functools.partial(
    jax.jit,
    static_argnames=("scale_factor", "upsample_kernel", "compute_dtype", "tile_h"))
def pixel_shuffle_pack(x_nchw, weight_oihw, bias, *, scale_factor,
                       upsample_kernel, compute_dtype=jnp.float32, tile_h=None):
    """PixelShufflePack forward: Conv2d(pad=(K-1)//2) + pixel_shuffle. NCHW in/out.

    weight_oihw: PyTorch Conv2d layout (Cout*s*s, Cin, K, K).  bias: (Cout*s*s,).
    """
    N, Cin, H, W = x_nchw.shape
    K = int(upsample_kernel)
    s = int(scale_factor)
    assert K % 2 == 1, "even upsample_kernel would need asymmetric padding"
    Cconv = weight_oihw.shape[0]
    assert weight_oihw.shape == (Cconv, Cin, K, K)
    assert Cconv % (s * s) == 0
    Cout = Cconv // (s * s)
    p = (K - 1) // 2
    Hp, Wp = H + 2 * p, W + 2 * p
    WpC = Wp * Cin
    WCc = W * Cconv

    # ---- one-time weight preprocessing (wrapper side, free) ----------------
    # OIHW -> HWIO, then band every kx tap into one (Wp*Cin, W*Cconv) matrix per ky:
    #   band[ky, wp*Cin+ci, w*Cconv+cc] = weight[ky, wp-w, ci, cc] if 0<=wp-w<K else 0
    w_hwio = jnp.transpose(weight_oihw, (2, 3, 1, 0))             # (K,K,Cin,Cconv)
    kx_mat = jnp.arange(Wp)[:, None] - jnp.arange(W)[None, :]     # (Wp, W)
    valid = (kx_mat >= 0) & (kx_mat < K)
    band = w_hwio[:, jnp.clip(kx_mat, 0, K - 1), :, :]            # (K,Wp,W,Cin,Cconv)
    band = jnp.where(valid[None, :, :, None, None], band, 0.0)
    band = jnp.transpose(band, (0, 1, 3, 2, 4)).reshape(K, WpC, WCc)
    band = band.astype(compute_dtype)
    bias_row = jnp.tile(bias.astype(jnp.float32), (W,)).reshape(1, WCc)

    # ---- activations: NCHW -> NHWC, pad halo, lane-fold Cin, ky-shift stack -
    # TODO(synk): accept NHWC upstream to drop this transpose + pad HBM pass.
    x_nhwc = jnp.transpose(x_nchw, (0, 2, 3, 1))
    xp = jnp.pad(x_nhwc, ((0, 0), (p, p), (p, p), (0, 0)))
    xp = xp.reshape(N, Hp, WpC).astype(compute_dtype)
    # xs[ky, n, r, :] = xp[n, r + ky, :]  -> kernel reads only aligned tiles.
    xs = jnp.stack([xp[:, ky:ky + H, :] for ky in range(K)], axis=0)  # (K,N,H,WpC)

    # ---- row-strip tile size + explicit VMEM budget ------------------------
    csz = jnp.dtype(compute_dtype).itemsize
    osz = jnp.dtype(x_nchw.dtype).itemsize
    fixed = 2 * K * WpC * WCc * csz + 2 * WCc * 4          # weights + bias (dbl-buf)
    per_row = 2 * K * WpC * csz + 2 * WCc * osz            # input strips + output
    if tile_h is None:
        tile_h = _pick_tile_h(H, fixed, per_row, budget_bytes=10 * 1024 * 1024)
    assert H % tile_h == 0 and (tile_h % 8 == 0 or tile_h == H)
    need = fixed + tile_h * per_row
    vmem_limit = int(min(64 * 1024 * 1024, max(32 * 1024 * 1024, 2 * need)))

    kernel = functools.partial(_conv_rows_kernel, K=K)
    y = pl.pallas_call(
        kernel,
        out_shape=jax.ShapeDtypeStruct((N, H, WCc), x_nchw.dtype),
        grid_spec=pltpu.PrefetchScalarGridSpec(
            num_scalar_prefetch=0,
            grid=(N, H // tile_h),
            in_specs=[
                pl.BlockSpec((K, 1, tile_h, WpC), lambda n, t: (0, n, t, 0)),
                pl.BlockSpec((K, WpC, WCc), lambda n, t: (0, 0, 0)),   # resident
                pl.BlockSpec((1, WCc), lambda n, t: (0, 0)),           # resident
            ],
            out_specs=pl.BlockSpec((1, tile_h, WCc), lambda n, t: (n, t, 0)),
        ),
        compiler_params=pltpu.CompilerParams(
            dimension_semantics=("parallel", "parallel"),
            vmem_limit_bytes=vmem_limit),
    )(xs, band, bias_row)

    # ---- pixel_shuffle (PyTorch semantics) + back to NCHW ------------------
    # TODO(synk): fuse this lane interleave into the kernel epilogue / emit NHWC.
    y = y.reshape(N, H, W, Cout, s, s)              # lanes ordered (w, c, i, j)
    y = jnp.transpose(y, (0, 3, 1, 4, 2, 5))        # (N, c, H, i, W, j)
    return y.reshape(N, Cout, H * s, W * s)


def _reference(x_nchw, weight_oihw, bias, s, K):
    """Pure-JAX reference (conv + pixel_shuffle) for correctness checks."""
    p = (K - 1) // 2
    w_hwio = jnp.transpose(weight_oihw, (2, 3, 1, 0))
    x_nhwc = jnp.transpose(x_nchw, (0, 2, 3, 1))
    y = lax.conv_general_dilated(
        x_nhwc, w_hwio, window_strides=(1, 1), padding=[(p, p), (p, p)],
        dimension_numbers=("NHWC", "HWIO", "NHWC"))
    y = y + bias[None, None, None, :]
    N, H, W, Cconv = y.shape
    Cout = Cconv // (s * s)
    y = y.reshape(N, H, W, Cout, s, s)
    y = jnp.transpose(y, (0, 3, 1, 4, 2, 5))
    return y.reshape(N, Cout, H * s, W * s)


if __name__ == "__main__":
    # PixelShufflePack(in_channels=4, out_channels=4, scale_factor=2, upsample_kernel=3)
    in_channels, out_channels, scale_factor, upsample_kernel = 4, 4, 2, 3
    N, H, W = 2, 16, 16
    Cconv = out_channels * scale_factor * scale_factor

    key = jax.random.PRNGKey(0)
    kx, kw, kb = jax.random.split(key, 3)
    x = jax.random.normal(kx, (N, in_channels, H, W), dtype=jnp.float32)
    # PyTorch Conv2d weight layout (O, I, Kh, Kw); converted to HWIO in the wrapper.
    weight_oihw = 0.1 * jax.random.normal(
        kw, (Cconv, in_channels, upsample_kernel, upsample_kernel), dtype=jnp.float32)
    bias = 0.05 * jax.random.normal(kb, (Cconv,), dtype=jnp.float32)

    ref = _reference(x, weight_oihw, bias, scale_factor, upsample_kernel)
    expected_shape = (N, out_channels, H * scale_factor, W * scale_factor)

    # f32 path, auto tile size.
    out = jax.block_until_ready(pixel_shuffle_pack(
        x, weight_oihw, bias,
        scale_factor=scale_factor, upsample_kernel=upsample_kernel))
    assert out.shape == expected_shape, out.shape
    assert jnp.allclose(out, ref, atol=1e-4, rtol=1e-4), "f32 mismatch vs reference"

    # Forced multi-row-strip path (exercises the 2-D grid / strip pipelining).
    out_t = jax.block_until_ready(pixel_shuffle_pack(
        x, weight_oihw, bias,
        scale_factor=scale_factor, upsample_kernel=upsample_kernel, tile_h=8))
    assert jnp.allclose(out_t, ref, atol=1e-4, rtol=1e-4), "tiled mismatch vs reference"

    # bf16 MXU-operand path (v6e/v7x fast path), f32 accumulation.
    out_bf = jax.block_until_ready(pixel_shuffle_pack(
        x, weight_oihw, bias,
        scale_factor=scale_factor, upsample_kernel=upsample_kernel,
        compute_dtype=jnp.bfloat16))
    assert out_bf.shape == expected_shape, out_bf.shape
    assert jnp.allclose(out_bf, ref, atol=5e-2, rtol=5e-2), "bf16 mismatch vs reference"

    print("KERNEL_OK")
</pallas_src>

<mosaic_0001>
module attributes {stable_mosaic.version = 11 : i64} {
  func.func @_conv_rows_kernel(%arg0: i32, %arg1: i32, %arg2: memref<3x1x16x72xf32, #tpu.memory_space<vmem>>, %arg3: memref<3x72x256xf32, #tpu.memory_space<vmem>>, %arg4: memref<1x256xf32, #tpu.memory_space<vmem>>, %arg5: memref<1x16x256xf32, #tpu.memory_space<vmem>>) attributes {dimension_semantics = [#tpu.dimension_semantics<parallel>, #tpu.dimension_semantics<parallel>], iteration_bounds = array<i64: 2, 1>, scalar_prefetch = 0 : i64, scratch_operands = 0 : i64, tpu.core_type = #tpu.core_type<tc>, window_params = [{transform_indices = @transform_0, window_bounds = array<i64: 3, 1, 16, 72>}, {pipeline_mode = #tpu.pipeline_mode<synchronous>, transform_indices = @transform_1, window_bounds = array<i64: 3, 72, 256>}, {pipeline_mode = #tpu.pipeline_mode<synchronous>, transform_indices = @transform_2, window_bounds = array<i64: 1, 256>}, {transform_indices = @transform_3, window_bounds = array<i64: 1, 16, 256>}]} {
    %c0 = arith.constant 0 : index
    %c0_0 = arith.constant 0 : index
    %c0_1 = arith.constant 0 : index
    %c0_2 = arith.constant 0 : index
    %0 = vector.load %arg2[%c0, %c0_0, %c0_1, %c0_2] : memref<3x1x16x72xf32, #tpu.memory_space<vmem>>, vector<1x1x16x72xf32>
    %1 = vector.shape_cast %0 : vector<1x1x16x72xf32> to vector<16x72xf32>
    %c0_3 = arith.constant 0 : index
    %c0_4 = arith.constant 0 : index
    %c0_5 = arith.constant 0 : index
    %2 = vector.load %arg3[%c0_3, %c0_4, %c0_5] : memref<3x72x256xf32, #tpu.memory_space<vmem>>, vector<1x72x256xf32>
    %3 = vector.shape_cast %2 : vector<1x72x256xf32> to vector<72x256xf32>
    %cst = arith.constant dense<0.000000e+00> : vector<16x256xf32>
    %4 = tpu.matmul %1, %3, %cst {dimension_numbers = #tpu.dot_dimension_numbers<[1], [0], [0], [1], [0, 0, 1, 1], [], []>} : vector<16x72xf32>, vector<72x256xf32>, vector<16x256xf32> -> vector<16x256xf32>
    %c1 = arith.constant 1 : index
    %c0_6 = arith.constant 0 : index
    %c0_7 = arith.constant 0 : index
    %c0_8 = arith.constant 0 : index
    %5 = vector.load %arg2[%c1, %c0_6, %c0_7, %c0_8] : memref<3x1x16x72xf32, #tpu.memory_space<vmem>>, vector<1x1x16x72xf32>
    %6 = vector.shape_cast %5 : vector<1x1x16x72xf32> to vector<16x72xf32>
    %c1_9 = arith.constant 1 : index
    %c0_10 = arith.constant 0 : index
    %c0_11 = arith.constant 0 : index
    %7 = vector.load %arg3[%c1_9, %c0_10, %c0_11] : memref<3x72x256xf32, #tpu.memory_space<vmem>>, vector<1x72x256xf32>
    %8 = vector.shape_cast %7 : vector<1x72x256xf32> to vector<72x256xf32>
    %cst_12 = arith.constant dense<0.000000e+00> : vector<16x256xf32>
    %9 = tpu.matmul %6, %8, %cst_12 {dimension_numbers = #tpu.dot_dimension_numbers<[1], [0], [0], [1], [0, 0, 1, 1], [], []>} : vector<16x72xf32>, vector<72x256xf32>, vector<16x256xf32> -> vector<16x256xf32>
    %10 = arith.addf %4, %9 : vector<16x256xf32>
    %c2 = arith.constant 2 : index
    %c0_13 = arith.constant 0 : index
    %c0_14 = arith.constant 0 : index
    %c0_15 = arith.constant 0 : index
    %11 = vector.load %arg2[%c2, %c0_13, %c0_14, %c0_15] : memref<3x1x16x72xf32, #tpu.memory_space<vmem>>, vector<1x1x16x72xf32>
    %12 = vector.shape_cast %11 : vector<1x1x16x72xf32> to vector<16x72xf32>
    %c2_16 = arith.constant 2 : index
    %c0_17 = arith.constant 0 : index
    %c0_18 = arith.constant 0 : index
    %13 = vector.load %arg3[%c2_16, %c0_17, %c0_18] : memref<3x72x256xf32, #tpu.memory_space<vmem>>, vector<1x72x256xf32>
    %14 = vector.shape_cast %13 : vector<1x72x256xf32> to vector<72x256xf32>
    %cst_19 = arith.constant dense<0.000000e+00> : vector<16x256xf32>
    %15 = tpu.matmul %12, %14, %cst_19 {dimension_numbers = #tpu.dot_dimension_numbers<[1], [0], [0], [1], [0, 0, 1, 1], [], []>} : vector<16x72xf32>, vector<72x256xf32>, vector<16x256xf32> -> vector<16x256xf32>
    %16 = arith.addf %10, %15 : vector<16x256xf32>
    %c0_20 = arith.constant 0 : index
    %c0_21 = arith.constant 0 : index
    %17 = vector.load %arg4[%c0_20, %c0_21] : memref<1x256xf32, #tpu.memory_space<vmem>>, vector<1x256xf32>
    %18 = vector.broadcast %17 : vector<1x256xf32> to vector<16x256xf32>
    %19 = arith.addf %16, %18 : vector<16x256xf32>
    %c0_22 = arith.constant 0 : index
    %c0_23 = arith.constant 0 : index
    %c0_24 = arith.constant 0 : index
    %20 = vector.load %arg5[%c0_22, %c0_23, %c0_24] : memref<1x16x256xf32, #tpu.memory_space<vmem>>, vector<1x16x256xf32>
    %21 = vector.shape_cast %20 : vector<1x16x256xf32> to vector<16x256xf32>
    %22 = vector.shape_cast %19 : vector<16x256xf32> to vector<1x16x256xf32>
    tpu.vector_store %arg5[%c0_22, %c0_23, %c0_24], %22 {strides = array<i32>} : memref<1x16x256xf32, #tpu.memory_space<vmem>>, vector<1x16x256xf32>,
    return
  }
  func.func @transform_0(%arg0: i32, %arg1: i32) -> (i32, i32, i32, i32) {
    %c0_i32 = arith.constant 0 : i32
    %c0_i32_0 = arith.constant 0 : i32
    %c0_i32_1 = arith.constant 0 : i32
    return %c0_i32, %arg0, %arg1, %c0_i32_0 : i32, i32, i32, i32
  }
  func.func @transform_1(%arg0: i32, %arg1: i32) -> (i32, i32, i32) {
    %c0_i32 = arith.constant 0 : i32
    %c0_i32_0 = arith.constant 0 : i32
    %c0_i32_1 = arith.constant 0 : i32
    %c0_i32_2 = arith.constant 0 : i32
    return %c0_i32, %c0_i32_0, %c0_i32_1 : i32, i32, i32
  }
  func.func @transform_2(%arg0: i32, %arg1: i32) -> (i32, i32) {
    %c0_i32 = arith.constant 0 : i32
    %c0_i32_0 = arith.constant 0 : i32
    %c0_i32_1 = arith.constant 0 : i32
    return %c0_i32, %c0_i32_0 : i32, i32
  }
  func.func @transform_3(%arg0: i32, %arg1: i32) -> (i32, i32, i32) {
    %c0_i32 = arith.constant 0 : i32
    %c0_i32_0 = arith.constant 0 : i32
    return %arg0, %arg1, %c0_i32 : i32, i32, i32
  }
}

</mosaic_0001>

<llo_original>
// kernel: tile.8
$region0: #{tile.8}
  #allocation0 [shape = 's32[1]{0}', space=sflag, size = 0x4, scoped, tag = 'scoped memory for tile.8']
  %s0 = inlined_call_operand.vmem [shape: f32[16], index: 0, kind: input, shape index: {}]
  %s1 = inlined_call_operand.vmem [shape: f32[16,16], index: 1, kind: output, shape index: {}]
  // Predicated region
  $region2: #{tile.8} parent=0 // pred_check
    _
  $region3: #{tile.8} parent=0 // pred_check_branch
    %3 = sbr.rel (0) target = $region5
  $region4: #{tile.8} parent=0 // pred_region
    _
  $region5: #{tile.8} parent=0 // pred_fallthru
    _
  %v4 = vld [vmem:[%s0] ss:$0 sm:$0xff]
  %5 = vst [vmem:[%s1] sm:$0xff] %v4
  %s6 = scalar_lea.vmem %s1, 8
  %7 = vst [vmem:[%s6] sm:$0xff] %v4

// kernel: tile.9
$region0: #{tile.9}
  %s0 = inlined_call_operand.vmem [shape: f32[16,16], index: 0, kind: input, shape index: {}]
  %s1 = inlined_call_operand.vmem [shape: f32[1,256], index: 1, kind: output, shape index: {}]
  $region1: #{tile.9} parent=0
    #allocation0 [shape = 'u8[8192]{0}', space=vmem, size = 0x2000, scoped, tag = 'scoped mem for output reshape']
    %s2 = smov 3
    %v3 = vld [vmem:[%s0] ss:$8 sm:%s2]
    %vm4 = vcmask 130048
    %5 = vst.msk [vmem:[#allocation0] ss:$8 sm:$0x3] %vm4, %v3
    %s6 = scalar_lea.vmem %s0, 7
    %s7 = smov 3
    %v8 = vld [vmem:[%s6] ss:$8 sm:%s7]
    %9 = vrot.lane.b32.xlu0 %v8, 112
    %v10 = vpop.permute.xlu0 %9
    %vm11 = vcmask 1048448
    %12 = vst.msk [vmem:[#allocation0] ss:$8 sm:$0x3] %vm11, %v10
    %s13 = scalar_lea.vmem %s0, 6
    %s14 = smov 3
    %v15 = vld [vmem:[%s13] ss:$8 sm:%s14]
    %16 = vrot.lane.b32.xlu0 %v15, 96
    %v17 = vpop.permute.xlu0 %16
    %vm18 = vcmask 917248
    %19 = vst.msk [vmem:[#allocation0] ss:$8 sm:$0x3] %vm18, %v17
    %s20 = scalar_lea.vmem %s0, 5
    %s21 = smov 3
    %v22 = vld [vmem:[%s20] ss:$8 sm:%s21]
    %23 = vrot.lane.b32.xlu0 %v22, 80
    %v24 = vpop.permute.xlu0 %23
    %vm25 = vcmask 786048
    %26 = vst.msk [vmem:[#allocation0] ss:$8 sm:$0x3] %vm25, %v24
    %s27 = scalar_lea.vmem %s0, 4
    %s28 = smov 3
    %v29 = vld [vmem:[%s27] ss:$8 sm:%s28]
    %30 = vrot.lane.b32.xlu0 %v29, 64
    %v31 = vpop.permute.xlu0 %30
    %vm32 = vcmask 654848
    %33 = vst.msk [vmem:[#allocation0] ss:$8 sm:$0x3] %vm32, %v31
    %s34 = scalar_lea.vmem %s0, 3
    %s35 = smov 3
    %v36 = vld [vmem:[%s34] ss:$8 sm:%s35]
    %37 = vrot.lane.b32.xlu0 %v36, 48
    %v38 = vpop.permute.xlu0 %37
    %vm39 = vcmask 523648
    %40 = vst.msk [vmem:[#allocation0] ss:$8 sm:$0x3] %vm39, %v38
    %s41 = scalar_lea.vmem %s0, 2
    %s42 = smov 3
    %v43 = vld [vmem:[%s41] ss:$8 sm:%s42]
    %44 = vrot.lane.b32.xlu0 %v43, 32
    %v45 = vpop.permute.xlu0 %44
    %vm46 = vcmask 392448
    %47 = vst.msk [vmem:[#allocation0] ss:$8 sm:$0x3] %vm46, %v45
    %s48 = scalar_lea.vmem %s0, 1
    %s49 = smov 3
    %v50 = vld [vmem:[%s48] ss:$8 sm:%s49]
    %51 = vrot.lane.b32.xlu0 %v50, 16
    %v52 = vpop.permute.xlu0 %51
    %vm53 = vcmask 261248
    %54 = vst.msk [vmem:[#allocation0] ss:$8 sm:$0x3] %vm53, %v52
    %s56 = sshllo.u32 0, 1
    %v58 = vld [vmem:[#allocation0] sm:%s56]
    %s59 = sshllo.u32 0, 1
    %60 = vst [vmem:[%s1] sm:%s59] %v58
    %s61 = scalar_lea.vmem [#allocation0], 8
    %v62 = vld [vmem:[%s61] sm:%s56]
    %s63 = sshllo.u32 0, 1
    %s64 = scalar_lea.vmem %s1, 1
    %65 = vst [vmem:[%s64] sm:%s63] %v62

// kernel: pixel_shuffle_pack.1
$region0: #{pixel_shuffle_pack.1}
  #allocation0 [shape = 'u32[]', space=smem, size = 0x4, offset = 0x4, fixed_abs, tag = 'smem constant byte address 0x4 - core index']
  #allocation1 [shape = 'u32[144,128]{1,0:T(1,128)}', space=vmem, size = 0x12000, scoped, tag = 'internal scratch']
  %s0 = inlined_call_operand.vmem [shape: f32[3,2,16,72], index: 0, kind: input, shape index: {}]
  %s1 = inlined_call_operand.vmem [shape: f32[3,72,256], index: 1, kind: input, shape index: {}]
  %s2 = inlined_call_operand.vmem [shape: f32[1,256], index: 2, kind: input, shape index: {}]
  %s3 = inlined_call_operand.vmem [shape: f32[2,16,256], index: 3, kind: output, shape index: {}]
  %s4 = sld [smem:[#allocation0]]
  $region83: #{pixel_shuffle_pack.1} parent=0
    _
  %s6 = ssub.s32 1, %s4
  %s7 = scalar_select 0, %s6, %s4
  $region1: #{pixel_shuffle_pack.1} parent=0
    #allocation2 [shape = 'u8[49152]{0}', space=vmem, size = 0xc000, scoped, tag = 'input window, operand 0']
    loop: start=0, step=1, limit=4
    $region2: #{pixel_shuffle_pack.1} parent=1 // loop_pre_header
      _
    $region3: #{pixel_shuffle_pack.1} parent=1 // loop_header
      %s9 = sphi 0, %s13
      %p10 = scmp.ge.s32.totalorder %s9, 4
      %s16 = sphi 0, %s28
      %s17 = sphi 0, %s24
      %s18 = sphi 0, %s16
      %s19 = sphi 0, %s17
      %s20 = sphi 0, %s18
      %s21 = sphi 0, %s19
      %s33 = sphi 0, %s35
      %s36 = sphi 0, %s33
      %s37 = sphi 0, %s36
      %s53 = sphi 0, %s37
      %s57 = sphi 0, %s57
      %s59 = sphi 0, %s57
      %s60 = sphi 0, %s59
      %s74 = sphi 0, %s60
      %s78 = sphi 0, %s78
      %s80 = sphi 0, %s78
      %s81 = sphi 0, %s80
      %s95 = sphi 0, %s81
      %s103 = sphi 0, %s105
      %s106 = sphi 0, %s103
      %s107 = sphi 0, %s106
      %s123 = sphi 0, %s107
    $region4: #{pixel_shuffle_pack.1} parent=1 // loop_header_branch
      %12 = sbr.rel (%p10) target = $region8
    $region5: #{pixel_shuffle_pack.1} parent=1 // loop_body
      %s14 = ssub.s32 %s9, 1
      %s15 = ssub.s32 %s9, 2
      %s22 = sadd.s32 1, %s17
      %p23 = scmp.ge.s32.totalorder %s22, 1
      %s24 = scalar_select %p23, 0, %s22
      %s25 = sadd.s32 1, %s16
      %s26 = scalar_select %p23, %s25, %s16
      %p27 = scmp.ge.s32.totalorder %s26, 2
      %s28 = scalar_select %p27, 0, %s26
      %s29 = ssub.s32 %s16, %s28
      %s30 = ssub.s32 %s17, %s24
      %s31 = sor.u32 %s29, %s30
      %p32 = scmp.eq.s32.totalorder %s31, 0
      %s34 = sadd.s32 %s33, 1
      %s35 = scalar_select %p32, %s33, %s34
      %p38 = pneg %p32
      %p39 = scmp.eq.s32.totalorder %s9, 1
      %p40 = por %p38, %p39
      %p41 = scmp.ne.s32.totalorder %s33, %s36
      %p42 = scmp.eq.s32.totalorder %s9, 0
      %p43 = por %p41, %p42
      %p44 = scmp.ne.s32.totalorder %s33, %s36
      %p45 = scmp.eq.s32.totalorder %s14, 1
      %p46 = por %p44, %p45
      %p47 = scmp.ne.s32.totalorder %s36, %s37
      %p48 = scmp.eq.s32.totalorder %s14, 0
      %p49 = por %p47, %p48
      %p50 = scmp.ne.s32.totalorder %s36, %s37
      %p51 = scmp.eq.s32.totalorder %s15, 1
      %p52 = por %p50, %p51
      %p54 = scmp.ne.s32.totalorder %s37, %s53
      %p55 = scmp.eq.s32.totalorder %s15, 0
      %p56 = por %p54, %p55
      %s58 = sadd.s32 %s57, 1
      %p61 = scmp.eq.s32.totalorder %s9, 1
      %p62 = scmp.ne.s32.totalorder %s57, %s59
      %p63 = scmp.eq.s32.totalorder %s9, 0
      %p64 = por %p62, %p63
      %p65 = scmp.ne.s32.totalorder %s57, %s59
      %p66 = scmp.eq.s32.totalorder %s14, 1
      %p67 = por %p65, %p66
      %p68 = scmp.ne.s32.totalorder %s59, %s60
      %p69 = scmp.eq.s32.totalorder %s14, 0
      %p70 = por %p68, %p69
      %p71 = scmp.ne.s32.totalorder %s59, %s60
      %p72 = scmp.eq.s32.totalorder %s15, 1
      %p73 = por %p71, %p72
      %p75 = scmp.ne.s32.totalorder %s60, %s74
      %p76 = scmp.eq.s32.totalorder %s15, 0
      %p77 = por %p75, %p76
      %s79 = sadd.s32 %s78, 1
      %p82 = scmp.eq.s32.totalorder %s9, 1
      %p83 = scmp.ne.s32.totalorder %s78, %s80
      %p84 = scmp.eq.s32.totalorder %s9, 0
      %p85 = por %p83, %p84
      %p86 = scmp.ne.s32.totalorder %s78, %s80
      %p87 = scmp.eq.s32.totalorder %s14, 1
      %p88 = por %p86, %p87
      %p89 = scmp.ne.s32.totalorder %s80, %s81
      %p90 = scmp.eq.s32.totalorder %s14, 0
      %p91 = por %p89, %p90
      %p92 = scmp.ne.s32.totalorder %s80, %s81
      %p93 = scmp.eq.s32.totalorder %s15, 1
      %p94 = por %p92, %p93
      %p96 = scmp.ne.s32.totalorder %s81, %s95
      %p97 = scmp.eq.s32.totalorder %s15, 0
      %p98 = por %p96, %p97
      %s99 = ssub.s32 %s16, %s28
      %s100 = ssub.s32 %s17, %s24
      %s101 = sor.u32 %s99, %s100
      %p102 = scmp.eq.s32.totalorder %s101, 0
      %s104 = sadd.s32 %s103, 1
      %s105 = scalar_select %p102, %s103, %s104
      %p108 = pneg %p102
      %p109 = scmp.eq.s32.totalorder %s9, 1
      %p110 = por %p108, %p109
      %p111 = scmp.ne.s32.totalorder %s103, %s106
      %p112 = scmp.eq.s32.totalorder %s9, 0
      %p113 = por %p111, %p112
      %p114 = scmp.ne.s32.totalorder %s103, %s106
      %p115 = scmp.eq.s32.totalorder %s14, 1
      %p116 = por %p114, %p115
      %p117 = scmp.ne.s32.totalorder %s106, %s107
      %p118 = scmp.eq.s32.totalorder %s14, 0
      %p119 = por %p117, %p118
      %p120 = scmp.ne.s32.totalorder %s106, %s107
      %p121 = scmp.eq.s32.totalorder %s15, 1
      %p122 = por %p120, %p121
      %p124 = scmp.ne.s32.totalorder %s107, %s123
      %p125 = scmp.eq.s32.totalorder %s15, 0
      %p126 = por %p124, %p125
      %p127 = scmp.le.s32.totalorder 1, %s9
      %p128 = scmp.lt.s32.totalorder %s9, 3
      %p129 = pnand %p127, %p128
      %p130 = pneg %p129
      // Predicated region
      $region9: #{pixel_shuffle_pack.1} parent=5 // pred_check
        _
      $region10: #{pixel_shuffle_pack.1} parent=5 // pred_check_branch
        %132 = sbr.rel (%p129) target = $region12
      $region11: #{pixel_shuffle_pack.1} parent=5 // pred_region
        %s133 = ssub.s32 %s9, 1
        // Predicated region
        $region13: #{pixel_shuffle_pack.1} parent=11 // pred_check
          %p134 = pneg %p70
        $region14: #{pixel_shuffle_pack.1} parent=11 // pred_check_branch
          %136 = sbr.rel (%p134) target = $region16
        $region15: #{pixel_shuffle_pack.1} parent=11 // pred_region
          _
        $region16: #{pixel_shuffle_pack.1} parent=11 // pred_fallthru
          _
        // Predicated region
        $region17: #{pixel_shuffle_pack.1} parent=11 // pred_check
          %p137 = pneg %p91
        $region18: #{pixel_shuffle_pack.1} parent=11 // pred_check_branch
          %139 = sbr.rel (%p137) target = $region20
        $region19: #{pixel_shuffle_pack.1} parent=11 // pred_region
          _
        $region20: #{pixel_shuffle_pack.1} parent=11 // pred_fallthru
          _
      $region12: #{pixel_shuffle_pack.1} parent=5 // pred_fallthru
        _
      %p140 = scmp.lt.s32.totalorder %s9, 2
      // Predicated region
      $region21: #{pixel_shuffle_pack.1} parent=5 // pred_check
        %p141 = pneg %p140
      $region22: #{pixel_shuffle_pack.1} parent=5 // pred_check_branch
        %143 = sbr.rel (%p141) target = $region24
      $region23: #{pixel_shuffle_pack.1} parent=5 // pred_region
        // Predicated region
        $region25: #{pixel_shuffle_pack.1} parent=23 // pred_check
          %p144 = pneg %p43
        $region26: #{pixel_shuffle_pack.1} parent=23 // pred_check_branch
          %146 = sbr.rel (%p144) target = $region28
        $region27: #{pixel_shuffle_pack.1} parent=23 // pred_region
          %s147 = sand.u32 %s33, 1
          %s148 = sand.u32 %s33, 1
          %s149 = smul.addr %s148, 48
          %s150 = scalar_lea.vmem [#allocation2], %s149
          %s151 = smul.u32 2, %s17
          %s152 = smul.addr %s16, 2
          %s153 = sadd.s32 %s151, %s152
          %s154 = smul.addr %s153, 8
          %s155 = scalar_lea.vmem %s0, %s154
          // Predicated region
          $region29: #{pixel_shuffle_pack.1} parent=27 // pred_check
            _
          $region30: #{pixel_shuffle_pack.1} parent=27 // pred_check_branch
            %157 = sbr.rel (0) target = $region32
          $region31: #{pixel_shuffle_pack.1} parent=27 // pred_region
            // Predicated region
            $region33: #{pixel_shuffle_pack.1} parent=31 // pred_check
              _
            $region34: #{pixel_shuffle_pack.1} parent=31 // pred_check_branch
              %159 = sbr.rel (0) target = $region36
            $region35: #{pixel_shuffle_pack.1} parent=31 // pred_region
              // Predicated region
              $region48: #{pixel_shuffle_pack.1} parent=35 // pred_check
                _
              $region49: #{pixel_shuffle_pack.1} parent=35 // pred_check_branch
                %184 = sbr.rel (0) target = $region51
              $region50: #{pixel_shuffle_pack.1} parent=35 // pred_region
                loop: start=0, step=1, limit=1
                $region52: #{pixel_shuffle_pack.1} parent=50 // loop_pre_header
                  _
                $region53: #{pixel_shuffle_pack.1} parent=50 // loop_header
                  %s186 = sphi 0, %s190
                  %p187 = scmp.ge.s32.totalorder %s186, 1
                  %s191 = sphi %s155, %s155
                  %s192 = sphi %s150, %s150
                $region54: #{pixel_shuffle_pack.1} parent=50 // loop_header_branch
                  %189 = sbr.rel (%p187) target = $region58
                $region55: #{pixel_shuffle_pack.1} parent=50 // loop_body
                  %v193 = vld [vmem:[%s191] sm:$0xff]
                  %194 = vst [vmem:[%s192] sm:$0xff] %v193
                  %v195 = vld [vmem:[%s191 + $0x8] sm:$0xff]
                  %196 = vst [vmem:[%s192 + $0x8] sm:$0xff] %v195
                  %v197 = vld [vmem:[%s191 + $0x20] sm:$0xff]
                  %198 = vst [vmem:[%s192 + $0x10] sm:$0xff] %v197
                  %v199 = vld [vmem:[%s191 + $0x28] sm:$0xff]
                  %200 = vst [vmem:[%s192 + $0x18] sm:$0xff] %v199
                  %v201 = vld [vmem:[%s191 + $0x40] sm:$0xff]
                  %202 = vst [vmem:[%s192 + $0x20] sm:$0xff] %v201
                  %v203 = vld [vmem:[%s191 + $0x48] sm:$0xff]
                  %204 = vst [vmem:[%s192 + $0x28] sm:$0xff] %v203
                $region56: #{pixel_shuffle_pack.1} parent=50 // loop_footer
                  %s190 = sadd.s32 1, %s186
                $region57: #{pixel_shuffle_pack.1} parent=50 // loop_footer_branch
                  %185 = sbr.rel target = $region53
                $region58: #{pixel_shuffle_pack.1} parent=50 // loop_exit
                  _
              $region51: #{pixel_shuffle_pack.1} parent=35 // pred_fallthru
                _
              // Predicated region
              $region59: #{pixel_shuffle_pack.1} parent=35 // pred_check
                _
              $region60: #{pixel_shuffle_pack.1} parent=35 // pred_check_branch
                %206 = sbr.rel target = $region62
              $region61: #{pixel_shuffle_pack.1} parent=35 // pred_region
                _
              $region62: #{pixel_shuffle_pack.1} parent=35 // pred_fallthru
                _
            $region36: #{pixel_shuffle_pack.1} parent=31 // pred_fallthru
              _
            // Predicated region
            $region37: #{pixel_shuffle_pack.1} parent=31 // pred_check
              _
            $region38: #{pixel_shuffle_pack.1} parent=31 // pred_check_branch
              %161 = sbr.rel target = $region40
            $region39: #{pixel_shuffle_pack.1} parent=31 // pred_region
              loop: start=0, step=1, limit=1
              $region41: #{pixel_shuffle_pack.1} parent=39 // loop_pre_header
                _
              $region42: #{pixel_shuffle_pack.1} parent=39 // loop_header
                %s164 = sphi 0, %s168
                %p165 = scmp.ge.s32.totalorder %s164, 1
                %s169 = sphi %s155, %s155
                %s170 = sphi %s150, %s150
              $region43: #{pixel_shuffle_pack.1} parent=39 // loop_header_branch
                %167 = sbr.rel (%p165) target = $region47
              $region44: #{pixel_shuffle_pack.1} parent=39 // loop_body
                %v171 = vld [vmem:[%s169] sm:$0xff]
                %172 = vst [vmem:[%s170] sm:$0xff] %v171
                %v173 = vld [vmem:[%s169 + $0x8] sm:$0xff]
                %174 = vst [vmem:[%s170 + $0x8] sm:$0xff] %v173
                %v175 = vld [vmem:[%s169 + $0x20] sm:$0xff]
                %176 = vst [vmem:[%s170 + $0x10] sm:$0xff] %v175
                %v177 = vld [vmem:[%s169 + $0x28] sm:$0xff]
                %178 = vst [vmem:[%s170 + $0x18] sm:$0xff] %v177
                %v179 = vld [vmem:[%s169 + $0x40] sm:$0xff]
                %180 = vst [vmem:[%s170 + $0x20] sm:$0xff] %v179
                %v181 = vld [vmem:[%s169 + $0x48] sm:$0xff]
                %182 = vst [vmem:[%s170 + $0x28] sm:$0xff] %v181
              $region45: #{pixel_shuffle_pack.1} parent=39 // loop_footer
                %s168 = sadd.s32 1, %s164
              $region46: #{pixel_shuffle_pack.1} parent=39 // loop_footer_branch
                %163 = sbr.rel target = $region42
              $region47: #{pixel_shuffle_pack.1} parent=39 // loop_exit
                _
            $region40: #{pixel_shuffle_pack.1} parent=31 // pred_fallthru
              _
          $region32: #{pixel_shuffle_pack.1} parent=27 // pred_fallthru
            _
          %207 = vnop
        $region28: #{pixel_shuffle_pack.1} parent=23 // pred_fallthru
          _
      $region24: #{pixel_shuffle_pack.1} parent=5 // pred_fallthru
        _
      %p208 = scmp.le.s32.totalorder 1, %s9
      %p209 = scmp.lt.s32.totalorder %s9, 3
      %p210 = pnand %p208, %p209
      %p211 = pneg %p210
      // Predicated region
      $region63: #{pixel_shuffle_pack.1} parent=5 // pred_check
        _
      $region64: #{pixel_shuffle_pack.1} parent=5 // pred_check_branch
        %213 = sbr.rel (%p210) target = $region66
      $region65: #{pixel_shuffle_pack.1} parent=5 // pred_region
        %s214 = ssub.s32 %s9, 1
        %s215 = sand.u32 %s36, 1
        %s216 = sand.u32 %s36, 1
        %s217 = smul.addr %s216, 48
        %s218 = scalar_lea.vmem [#allocation2], %s217
        // Predicated region
        $region67: #{pixel_shuffle_pack.1} parent=65 // pred_check
          %p219 = pneg %p49
        $region68: #{pixel_shuffle_pack.1} parent=65 // pred_check_branch
          %221 = sbr.rel (%p219) target = $region70
        $region69: #{pixel_shuffle_pack.1} parent=65 // pred_region
          _
        $region70: #{pixel_shuffle_pack.1} parent=65 // pred_fallthru
          _
        %s222 = sand.u32 %s36, 1
        %s223 = sand.u32 %s36, 1
        %s224 = smul.addr %s223, 48
        %s225 = scalar_lea.vmem [#allocation2], %s224
        %p226 = pneg %p49
        %p227 = pneg %p46
        %p228 = pneg %p70
        %p229 = pneg %p67
        %p230 = pneg %p91
        %p231 = pneg %p88
        %p232 = pneg %p119
        %p233 = pneg %p116
        %s234 = smul.u32 2, %s19
        %p235 = scmp.lt.s32.totalorder %s18, 1
        %s236 = scalar_select %p235, %s18, 1
        %p237 = scmp.lt.s32.totalorder %s234, 1
        %s238 = scalar_select %p237, %s234, 1
        %s239 = smul.addr %s238, 2
        %s240 = smul.addr %s236, 4
        %s241 = sadd.s32 %s239, %s240
        %s242 = smul.addr %s241, 8
        %s243 = scalar_lea.vmem %s3, %s242
        %s244 = smul.u32 2, %s19
        %s245 = smul.u32 2, %s19
        %p246 = scmp.lt.s32.totalorder %s18, 1
        %s247 = scalar_select %p246, %s18, 1
        %p248 = scmp.lt.s32.totalorder %s245, 1
        %s249 = scalar_select %p248, %s245, 1
        %s250 = smul.addr %s249, 2
        %s251 = smul.addr %s247, 4
        %s252 = sadd.s32 %s250, %s251
        %s253 = smul.addr %s252, 8
        %s254 = scalar_lea.vmem %s3, %s253
        %s255 = smul.u32 2, %s19
        %v256 = vld [vmem:[%s218] sm:$0xff]
        %v257 = vld [vmem:[%s218 + $0x8] sm:$0xff]
        %v258 = vld [vmem:[%s1] sm:$0xff]
        %v259 = vld [vmem:[%s1 + $0x8] sm:$0xff]
        %v260 = vld [vmem:[%s1 + $0x10] sm:$0xff]
        %v261 = vld [vmem:[%s1 + $0x18] sm:$0xff]
        %v262 = vld [vmem:[%s1 + $0x20] sm:$0xff]
        %v263 = vld [vmem:[%s1 + $0x28] sm:$0xff]
        %v264 = vld [vmem:[%s1 + $0x30] sm:$0xff]
        %v265 = vld [vmem:[%s1 + $0x38] sm:$0xff]
        %v266 = vld [vmem:[%s1 + $0x40] sm:$0xff]
        %v267 = vld [vmem:[%s1 + $0x48] sm:$0xff]
        %v268 = vld [vmem:[%s1 + $0x50] sm:$0xff]
        %v269 = vld [vmem:[%s1 + $0x58] sm:$0xff]
        %v270 = vld [vmem:[%s1 + $0x60] sm:$0xff]
        %v271 = vld [vmem:[%s1 + $0x68] sm:$0xff]
        %v272 = vld [vmem:[%s1 + $0x70] sm:$0xff]
        %v273 = vld [vmem:[%s1 + $0x78] sm:$0xff]
        %v274 = vld [vmem:[%s1 + $0x80] sm:$0xff]
        %v275 = vld [vmem:[%s1 + $0x88] sm:$0xff]
        %s276 = scalar_lea.vmem %s218, 16 [#allocation2]
        %v277 = vld [vmem:[%s276] sm:$0xff]
        %v278 = vld [vmem:[%s276 + $0x8] sm:$0xff]
        %s279 = scalar_lea.vmem %s1, 144
        %v280 = vld [vmem:[%s279] sm:$0xff]
        %v281 = vld [vmem:[%s279 + $0x8] sm:$0xff]
        %v282 = vld [vmem:[%s279 + $0x10] sm:$0xff]
        %v283 = vld [vmem:[%s279 + $0x18] sm:$0xff]
        %v284 = vld [vmem:[%s279 + $0x20] sm:$0xff]
        %v285 = vld [vmem:[%s279 + $0x28] sm:$0xff]
        %v286 = vld [vmem:[%s279 + $0x30] sm:$0xff]
        %v287 = vld [vmem:[%s279 + $0x38] sm:$0xff]
        %v288 = vld [vmem:[%s279 + $0x40] sm:$0xff]
        %v289 = vld [vmem:[%s279 + $0x48] sm:$0xff]
        %v290 = vld [vmem:[%s279 + $0x50] sm:$0xff]
        %v291 = vld [vmem:[%s279 + $0x58] sm:$0xff]
        %v292 = vld [vmem:[%s279 + $0x60] sm:$0xff]
        %v293 = vld [vmem:[%s279 + $0x68] sm:$0xff]
        %v294 = vld [vmem:[%s279 + $0x70] sm:$0xff]
        %v295 = vld [vmem:[%s279 + $0x78] sm:$0xff]
        %v296 = vld [vmem:[%s279 + $0x80] sm:$0xff]
        %v297 = vld [vmem:[%s279 + $0x88] sm:$0xff]
        %vm298 = vcmask 588800
        %v300 = vsel %vm298, %v277, 0
        %v303 = vsel %vm298, %v278, 0
        %305 = vmatprep.subr.mxu0 %v281
        %306 = vmatpush1.msra.mxu0 %v280
        %307 = vmatprep.subr.mxu0 %v283
        %308 = vmatpush1.msra.mxu0 %v282
        %309 = vmatprep.subr.mxu0 %v285
        %310 = vmatpush1.msra.mxu0 %v284
        %311 = vmatprep.subr.mxu0 %v287
        %312 = vmatpush1.msra.mxu0 %v286
        %313 = vmatprep.subr.mxu0 %v289
        %314 = vmatpush1.msra.mxu0 %v288
        %315 = vmatprep.subr.mxu0 %v291
        %316 = vmatpush1.msra.mxu0 %v290
        %317 = vmatprep.subr.mxu0 %v293
        %318 = vmatpush1.msra.mxu0 %v292
        %319 = vmatprep.subr.mxu0 %v295
        %320 = vmatpush1.msra.mxu0 %v294
        %321 = vmatprep.subr.mxu0 %v297
        %322 = vmatpush1.msra.mxu0 %v296
        %323 = vmatprep.subr.mxu0 0.0
        %324 = vmatpush1.msra.mxu0 0.0
        %325 = vmatprep.subr.mxu0 0.0
        %326 = vmatpush1.msra.mxu0 0.0
        %327 = vmatprep.subr.mxu0 0.0
        %328 = vmatpush1.msra.mxu0 0.0
        %329 = vmatprep.subr.mxu0 0.0
        %330 = vmatpush1.msra.mxu0 0.0
        %331 = vmatprep.subr.mxu0 0.0
        %332 = vmatpush1.msra.mxu0 0.0
        %333 = vmatprep.subr.mxu0 0.0
        %334 = vmatpush1.msra.mxu0 0.0
        %335 = vmatprep.subr.mxu0 0.0
        %336 = vmatpush1.msra.mxu0 0.0
        %337 = vmatprep.subr.mxu0 0.0
        %338 = vmatpush1.msra.mxu0 0.0
        %339 = vmatprep.subr.mxu0 0.0
        %340 = vmatpush1.msra.mxu0 0.0
        %341 = vmatprep.subr.mxu0 0.0
        %342 = vmatpush1.msra.mxu0 0.0
        %343 = vmatprep.subr.mxu0 0.0
        %344 = vmatpush1.msra.mxu0 0.0
        %345 = vmatprep.subr.mxu0 0.0
        %346 = vmatpush1.msra.mxu0 0.0
        %347 = vmatprep.subr.mxu0 0.0
        %348 = vmatpush1.msra.mxu0 0.0
        %349 = vmatprep.subr.mxu0 0.0
        %350 = vmatpush1.msra.mxu0 0.0
        %351 = vmatprep.subr.mxu0 0.0
        %352 = vmatpush1.msra.mxu0 0.0
        %353 = vmatprep.subr.mxu0 0.0
        %354 = vmatpush1.msra.mxu0 0.0
        %355 = vmatprep.subr.mxu0 0.0
        %356 = vmatpush1.msra.mxu0 0.0
        %357 = vmatprep.subr.mxu0 0.0
        %358 = vmatpush1.msra.mxu0 0.0
        %359 = vmatprep.subr.mxu0 0.0
        %360 = vmatpush1.msra.mxu0 0.0
        %361 = vmatprep.subr.mxu0 0.0
        %362 = vmatpush1.msra.mxu0 0.0
        %363 = vmatprep.subr.mxu0 0.0
        %364 = vmatpush1.msra.mxu0 0.0
        %365 = vmatprep.subr.mxu0 0.0
        %366 = vmatpush1.msra.mxu0 0.0
        %367 = vmatprep.subr.mxu0 0.0
        %368 = vmatpush1.msra.mxu0 0.0
        %369 = vmatprep.mubr.f32.mxu0 0.0
        %370 = vmatmul.mubr.f32.gmra.mrb[0].mxu0 %v300
        %v371 = vpop.f32.mrb[0].mxu0
        %v372 = vadd.f32 0.0, %v371
        %v373 = vpop.f32.mrb[0].mxu0
        %v374 = vadd.f32 0.0, %v373
        %375 = vmatprep.mubr.f32.mxu0 0.0
        %376 = vmatmul.mubr.f32.gmra.mrb[0].mxu0 %v303
        %v377 = vpop.f32.mrb[0].mxu0
        %v378 = vadd.f32 0.0, %v377
        %v379 = vpop.f32.mrb[0].mxu0
        %v380 = vadd.f32 0.0, %v379
        %381 = vdwg.mxu0
        %v383 = vsel %vm298, %v256, 0
        %v386 = vsel %vm298, %v257, 0
        %388 = vmatprep.subr.mxu0 %v259
        %389 = vmatpush1.msra.mxu0 %v258
        %390 = vmatprep.subr.mxu0 %v261
        %391 = vmatpush1.msra.mxu0 %v260
        %392 = vmatprep.subr.mxu0 %v263
        %393 = vmatpush1.msra.mxu0 %v262
        %394 = vmatprep.subr.mxu0 %v265
        %395 = vmatpush1.msra.mxu0 %v264
        %396 = vmatprep.subr.mxu0 %v267
        %397 = vmatpush1.msra.mxu0 %v266
        %398 = vmatprep.subr.mxu0 %v269
        %399 = vmatpush1.msra.mxu0 %v268
        %400 = vmatprep.subr.mxu0 %v271
        %401 = vmatpush1.msra.mxu0 %v270
        %402 = vmatprep.subr.mxu0 %v273
        %403 = vmatpush1.msra.mxu0 %v272
        %404 = vmatprep.subr.mxu0 %v275
        %405 = vmatpush1.msra.mxu0 %v274
        %406 = vmatprep.subr.mxu0 0.0
        %407 = vmatpush1.msra.mxu0 0.0
        %408 = vmatprep.subr.mxu0 0.0
        %409 = vmatpush1.msra.mxu0 0.0
        %410 = vmatprep.subr.mxu0 0.0
        %411 = vmatpush1.msra.mxu0 0.0
        %412 = vmatprep.subr.mxu0 0.0
        %413 = vmatpush1.msra.mxu0 0.0
        %414 = vmatprep.subr.mxu0 0.0
        %415 = vmatpush1.msra.mxu0 0.0
        %416 = vmatprep.subr.mxu0 0.0
        %417 = vmatpush1.msra.mxu0 0.0
        %418 = vmatprep.subr.mxu0 0.0
        %419 = vmatpush1.msra.mxu0 0.0
        %420 = vmatprep.subr.mxu0 0.0
        %421 = vmatpush1.msra.mxu0 0.0
        %422 = vmatprep.subr.mxu0 0.0
        %423 = vmatpush1.msra.mxu0 0.0
        %424 = vmatprep.subr.mxu0 0.0
        %425 = vmatpush1.msra.mxu0 0.0
        %426 = vmatprep.subr.mxu0 0.0
        %427 = vmatpush1.msra.mxu0 0.0
        %428 = vmatprep.subr.mxu0 0.0
        %429 = vmatpush1.msra.mxu0 0.0
        %430 = vmatprep.subr.mxu0 0.0
        %431 = vmatpush1.msra.mxu0 0.0
        %432 = vmatprep.subr.mxu0 0.0
        %433 = vmatpush1.msra.mxu0 0.0
        %434 = vmatprep.subr.mxu0 0.0
        %435 = vmatpush1.msra.mxu0 0.0
        %436 = vmatprep.subr.mxu0 0.0
        %437 = vmatpush1.msra.mxu0 0.0
        %438 = vmatprep.subr.mxu0 0.0
        %439 = vmatpush1.msra.mxu0 0.0
        %440 = vmatprep.subr.mxu0 0.0
        %441 = vmatpush1.msra.mxu0 0.0
        %442 = vmatprep.subr.mxu0 0.0
        %443 = vmatpush1.msra.mxu0 0.0
        %444 = vmatprep.subr.mxu0 0.0
        %445 = vmatpush1.msra.mxu0 0.0
        %446 = vmatprep.subr.mxu0 0.0
        %447 = vmatpush1.msra.mxu0 0.0
        %448 = vmatprep.subr.mxu0 0.0
        %449 = vmatpush1.msra.mxu0 0.0
        %450 = vmatprep.subr.mxu0 0.0
        %451 = vmatpush1.msra.mxu0 0.0
        %452 = vmatprep.mubr.f32.mxu0 0.0
        %453 = vmatmul.mubr.f32.gmra.mrb[0].mxu0 %v383
        %v454 = vpop.f32.mrb[0].mxu0
        %v455 = vadd.f32 %v372, %v454
        %v456 = vpop.f32.mrb[0].mxu0
        %v457 = vadd.f32 %v374, %v456
        %458 = vmatprep.mubr.f32.mxu0 0.0
        %459 = vmatmul.mubr.f32.gmra.mrb[0].mxu0 %v386
        %v460 = vpop.f32.mrb[0].mxu0
        %v461 = vadd.f32 %v378, %v460
        %v462 = vpop.f32.mrb[0].mxu0
        %v463 = vadd.f32 %v380, %v462
        %464 = vdwg.mxu0
        %s465 = scalar_lea.vmem %s218, 32 [#allocation2]
        %v466 = vld [vmem:[%s465] sm:$0xff]
        %v467 = vld [vmem:[%s465 + $0x8] sm:$0xff]
        %s468 = scalar_lea.vmem %s1, 288
        %v469 = vld [vmem:[%s468] sm:$0xff]
        %v470 = vld [vmem:[%s468 + $0x8] sm:$0xff]
        %v471 = vld [vmem:[%s468 + $0x10] sm:$0xff]
        %v472 = vld [vmem:[%s468 + $0x18] sm:$0xff]
        %v473 = vld [vmem:[%s468 + $0x20] sm:$0xff]
        %v474 = vld [vmem:[%s468 + $0x28] sm:$0xff]
        %v475 = vld [vmem:[%s468 + $0x30] sm:$0xff]
        %v476 = vld [vmem:[%s468 + $0x38] sm:$0xff]
        %v477 = vld [vmem:[%s468 + $0x40] sm:$0xff]
        %v478 = vld [vmem:[%s468 + $0x48] sm:$0xff]
        %v479 = vld [vmem:[%s468 + $0x50] sm:$0xff]
        %v480 = vld [vmem:[%s468 + $0x58] sm:$0xff]
        %v481 = vld [vmem:[%s468 + $0x60] sm:$0xff]
        %v482 = vld [vmem:[%s468 + $0x68] sm:$0xff]
        %v483 = vld [vmem:[%s468 + $0x70] sm:$0xff]
        %v484 = vld [vmem:[%s468 + $0x78] sm:$0xff]
        %v485 = vld [vmem:[%s468 + $0x80] sm:$0xff]
        %v486 = vld [vmem:[%s468 + $0x88] sm:$0xff]
        %v488 = vsel %vm298, %v466, 0
        %v491 = vsel %vm298, %v467, 0
        %493 = vmatprep.subr.mxu0 %v470
        %494 = vmatpush1.msra.mxu0 %v469
        %495 = vmatprep.subr.mxu0 %v472
        %496 = vmatpush1.msra.mxu0 %v471
        %497 = vmatprep.subr.mxu0 %v474
        %498 = vmatpush1.msra.mxu0 %v473
        %499 = vmatprep.subr.mxu0 %v476
        %500 = vmatpush1.msra.mxu0 %v475
        %501 = vmatprep.subr.mxu0 %v478
        %502 = vmatpush1.msra.mxu0 %v477
        %503 = vmatprep.subr.mxu0 %v480
        %504 = vmatpush1.msra.mxu0 %v479
        %505 = vmatprep.subr.mxu0 %v482
        %506 = vmatpush1.msra.mxu0 %v481
        %507 = vmatprep.subr.mxu0 %v484
        %508 = vmatpush1.msra.mxu0 %v483
        %509 = vmatprep.subr.mxu0 %v486
        %510 = vmatpush1.msra.mxu0 %v485
        %511 = vmatprep.subr.mxu0 0.0
        %512 = vmatpush1.msra.mxu0 0.0
        %513 = vmatprep.subr.mxu0 0.0
        %514 = vmatpush1.msra.mxu0 0.0
        %515 = vmatprep.subr.mxu0 0.0
        %516 = vmatpush1.msra.mxu0 0.0
        %517 = vmatprep.subr.mxu0 0.0
        %518 = vmatpush1.msra.mxu0 0.0
        %519 = vmatprep.subr.mxu0 0.0
        %520 = vmatpush1.msra.mxu0 0.0
        %521 = vmatprep.subr.mxu0 0.0
        %522 = vmatpush1.msra.mxu0 0.0
        %523 = vmatprep.subr.mxu0 0.0
        %524 = vmatpush1.msra.mxu0 0.0
        %525 = vmatprep.subr.mxu0 0.0
        %526 = vmatpush1.msra.mxu0 0.0
        %527 = vmatprep.subr.mxu0 0.0
        %528 = vmatpush1.msra.mxu0 0.0
        %529 = vmatprep.subr.mxu0 0.0
        %530 = vmatpush1.msra.mxu0 0.0
        %531 = vmatprep.subr.mxu0 0.0
        %532 = vmatpush1.msra.mxu0 0.0
        %533 = vmatprep.subr.mxu0 0.0
        %534 = vmatpush1.msra.mxu0 0.0
        %535 = vmatprep.subr.mxu0 0.0
        %536 = vmatpush1.msra.mxu0 0.0
        %537 = vmatprep.subr.mxu0 0.0
        %538 = vmatpush1.msra.mxu0 0.0
        %539 = vmatprep.subr.mxu0 0.0
        %540 = vmatpush1.msra.mxu0 0.0
        %541 = vmatprep.subr.mxu0 0.0
        %542 = vmatpush1.msra.mxu0 0.0
        %543 = vmatprep.subr.mxu0 0.0
        %544 = vmatpush1.msra.mxu0 0.0
        %545 = vmatprep.subr.mxu0 0.0
        %546 = vmatpush1.msra.mxu0 0.0
        %547 = vmatprep.subr.mxu0 0.0
        %548 = vmatpush1.msra.mxu0 0.0
        %549 = vmatprep.subr.mxu0 0.0
        %550 = vmatpush1.msra.mxu0 0.0
        %551 = vmatprep.subr.mxu0 0.0
        %552 = vmatpush1.msra.mxu0 0.0
        %553 = vmatprep.subr.mxu0 0.0
        %554 = vmatpush1.msra.mxu0 0.0
        %555 = vmatprep.subr.mxu0 0.0
        %556 = vmatpush1.msra.mxu0 0.0
        %557 = vmatprep.mubr.f32.mxu0 0.0
        %558 = vmatmul.mubr.f32.gmra.mrb[0].mxu0 %v488
        %v559 = vpop.f32.mrb[0].mxu0
        %v560 = vadd.f32 0.0, %v559
        %v561 = vpop.f32.mrb[0].mxu0
        %v562 = vadd.f32 0.0, %v561
        %563 = vmatprep.mubr.f32.mxu0 0.0
        %564 = vmatmul.mubr.f32.gmra.mrb[0].mxu0 %v491
        %v565 = vpop.f32.mrb[0].mxu0
        %v566 = vadd.f32 0.0, %v565
        %v567 = vpop.f32.mrb[0].mxu0
        %v568 = vadd.f32 0.0, %v567
        %569 = vdwg.mxu0
        %v570 = vadd.f32 %v455, %v560
        %v571 = vadd.f32 %v457, %v562
        %v572 = vadd.f32 %v461, %v566
        %v573 = vadd.f32 %v463, %v568
        %v574 = vld [vmem:[%s2] sm:$0x3]
        %v576 = vlaneseq
        %v577 = vshrl.u32 %v576, 7
        %v578 = vsub.s32 0, %v577
        %v579 = vrot.slane %v574, %v578
        %v580 = vlaneseq
        %v581 = vshrl.u32 %v580, 7
        %v582 = vsub.s32 1, %v581
        %v583 = vrot.slane %v574, %v582
        %v586 = vadd.f32 %v570, %v579
        %v587 = vadd.f32 %v571, %v583
        %v588 = vadd.f32 %v572, %v579
        %v589 = vadd.f32 %v573, %v583
        %590 = vst [vmem:[%s254] sm:$0xff] %v586
        %591 = vst [vmem:[%s254 + $0x8] sm:$0xff] %v587
        %592 = vst [vmem:[%s254 + $0x10] sm:$0xff] %v588
        %593 = vst [vmem:[%s254 + $0x18] sm:$0xff] %v589
        %s594 = smul.u32 2, %s19
        %p595 = scmp.lt.s32.totalorder %s18, 1
        %s596 = scalar_select %p595, %s18, 1
        %p597 = scmp.lt.s32.totalorder %s594, 1
        %s598 = scalar_select %p597, %s594, 1
        %s599 = smul.addr %s598, 2
        %s600 = smul.addr %s596, 4
        %s601 = sadd.s32 %s599, %s600
        %s602 = smul.addr %s601, 8
        %s603 = scalar_lea.vmem %s3, %s602
        // Predicated region
        $region71: #{pixel_shuffle_pack.1} parent=65 // pred_check
          %p604 = pneg %p116
        $region72: #{pixel_shuffle_pack.1} parent=65 // pred_check_branch
          %606 = sbr.rel (%p604) target = $region74
        $region73: #{pixel_shuffle_pack.1} parent=65 // pred_region
          %s607 = smul.u32 2, %s19
        $region74: #{pixel_shuffle_pack.1} parent=65 // pred_fallthru
          _
      $region66: #{pixel_shuffle_pack.1} parent=5 // pred_fallthru
        _
      %p608 = scmp.le.s32.totalorder 2, %s9
      // Predicated region
      $region75: #{pixel_shuffle_pack.1} parent=5 // pred_check
        %p609 = pneg %p608
      $region76: #{pixel_shuffle_pack.1} parent=5 // pred_check_branch
        %611 = sbr.rel (%p609) target = $region78
      $region77: #{pixel_shuffle_pack.1} parent=5 // pred_region
        %s612 = ssub.s32 %s9, 2
        // Predicated region
        $region79: #{pixel_shuffle_pack.1} parent=77 // pred_check
          %p613 = pneg %p122
        $region80: #{pixel_shuffle_pack.1} parent=77 // pred_check_branch
          %615 = sbr.rel (%p613) target = $region82
        $region81: #{pixel_shuffle_pack.1} parent=77 // pred_region
          %s616 = smul.u32 2, %s21
          %p617 = scmp.lt.s32.totalorder %s20, 1
          %s618 = scalar_select %p617, %s20, 1
          %p619 = scmp.lt.s32.totalorder %s616, 1
          %s620 = scalar_select %p619, %s616, 1
          %s621 = smul.addr %s620, 2
          %s622 = smul.addr %s618, 4
          %s623 = sadd.s32 %s621, %s622
          %s624 = smul.addr %s623, 8
          %s625 = scalar_lea.vmem %s3, %s624
        $region82: #{pixel_shuffle_pack.1} parent=77 // pred_fallthru
          _
      $region78: #{pixel_shuffle_pack.1} parent=5 // pred_fallthru
        _
    $region6: #{pixel_shuffle_pack.1} parent=1 // loop_footer
      %s13 = sadd.s32 1, %s9
    $region7: #{pixel_shuffle_pack.1} parent=1 // loop_footer_branch
      %8 = sbr.rel target = $region3
    $region8: #{pixel_shuffle_pack.1} parent=1 // loop_exit
      _

</llo_original>
